<compile_context>
chip_gen: v7x
topology: tpu7x:2x2x1
jax: 0.10.0
libtpu: 0.0.40
codegen_flags: <defaults>
</compile_context>

<pallas_src>
import jax
import jax.numpy as jnp
from jax.experimental import pallas as pl
from jax.experimental.pallas import tpu as pltpu


def lagrangian_layer_kernel(q_ref, wq_ref, bq_ref, dprev_ref, wd_ref,
                            out_ref, der_ref):
    # Block shapes per grid step:
    #   q:     (TB, I)          wq: (I, H + H*D)   bq: (1, H + H*D)
    #   dprev: (TB, I*D)        wd: (I*D, H*D)
    #   out:   (TB, H)          der: (TB, H*D)
    H = out_ref.shape[1]

    # One MXU dot gives [a | a_rep]:
    #   a[:, h]           = q @ W^T + b              (pre-activation)
    #   a_rep[:, h*D + d] = a[:, h]                  (lane-replicated for mask)
    A = jax.lax.dot_general(
        q_ref[...], wq_ref[...], (((1,), (0,)), ((), ())),
        preferred_element_type=jnp.float32) + bq_ref[...]        # (TB, H + H*D)
    a = A[:, :H]
    a_rep = A[:, H:]

    out_ref[...] = jnp.maximum(a, 0.0)                           # ReLU

    # m[:, h*D + d] = (W @ der_prev)[:, h, d] via block-diagonal Wd.
    m = jax.lax.dot_general(
        dprev_ref[...], wd_ref[...], (((1,), (0,)), ((), ())),
        preferred_element_type=jnp.float32)                      # (TB, H*D)

    # ReLU'(a) == 1[a > 0], applied as a fused select in the final lane layout.
    der_ref[...] = jnp.where(a_rep > 0.0, m, 0.0)


def _pick_block_b(B):
    if B <= 1024:
        return B
    # >= 2 grid steps so v7x's 2 TensorCores both get work; rows multiple of 8.
    for cand in (2048, 1024, 512, 256, 128, 64, 32, 16, 8):
        if cand <= B // 2 and B % cand == 0:
            return cand
    return B


def lagrangian_layer(q, der_prev, weight, bias, *, block_b=None):
    """q: (B, I) f32, der_prev: (B, I, D) f32, weight: (H, I), bias: (H,)."""
    B, I = q.shape
    H = weight.shape[0]
    D = der_prev.shape[-1]

    if block_b is None:
        block_b = _pick_block_b(B)
    assert B % block_b == 0 and (block_b == B or block_b % 8 == 0)
    nb = B // block_b

    # ---- wrapper-side glue (weight-sized only, no batch-sized passes) ----
    # Free view: (B, I, D) -> (B, I*D), column index i*D + d.
    dprev_flat = der_prev.reshape(B, I * D)
    # [W^T | Wrep^T]: column h is W[h,:]; column H + h*D + d is W[h,:].
    wq = jnp.concatenate([weight.T, jnp.repeat(weight, D, axis=0).T], axis=1)
    bq = jnp.concatenate([bias, jnp.repeat(bias, D)]).reshape(1, H + H * D)
    # Block-diagonal-in-d weight: Wd[i*D+d, h*D+e] = W[h, i] * delta(d, e).
    wd = jnp.einsum('hi,de->idhe', weight,
                    jnp.eye(D, dtype=weight.dtype)).reshape(I * D, H * D)

    grid_spec = pltpu.PrefetchScalarGridSpec(
        num_scalar_prefetch=0,
        grid=(nb,),
        in_specs=[
            pl.BlockSpec((block_b, I),         lambda i: (i, 0)),  # q
            pl.BlockSpec((I, H + H * D),       lambda i: (0, 0)),  # [W^T|Wrep^T]
            pl.BlockSpec((1, H + H * D),       lambda i: (0, 0)),  # [b | b_rep]
            pl.BlockSpec((block_b, I * D),     lambda i: (i, 0)),  # der_prev flat
            pl.BlockSpec((I * D, H * D),       lambda i: (0, 0)),  # Wd
        ],
        out_specs=[
            pl.BlockSpec((block_b, H),         lambda i: (i, 0)),  # out
            pl.BlockSpec((block_b, H * D),     lambda i: (i, 0)),  # der flat
        ],
    )

    out, der_flat = pl.pallas_call(
        lagrangian_layer_kernel,
        out_shape=(
            jax.ShapeDtypeStruct((B, H), jnp.float32),
            jax.ShapeDtypeStruct((B, H * D), jnp.float32),
        ),
        grid_spec=grid_spec,
        compiler_params=pltpu.CompilerParams(
            dimension_semantics=("parallel",)),
    )(q, wq, bq, dprev_flat, wd)

    # Free view: (B, H*D) h-major/d-minor -> (B, H, D).
    der = der_flat.reshape(B, H, D)
    return out, der


def lagrangian_layer_reference(q, der_prev, weight, bias):
    a = q @ weight.T + bias
    out = jnp.maximum(a, 0.0)
    g_prime = (a > 0.0).astype(jnp.float32)
    der = jnp.matmul(g_prime[:, :, None] * weight[None], der_prev)
    return out, der


if __name__ == "__main__":
    # Small shapes consistent with the module:
    #   batch B=8, input_size I=16, n_dof H=32, chain-rule width D=2.
    B, I, H, D = 8, 16, 32, 2

    key = jax.random.PRNGKey(0)
    k_q, k_d, k_w, k_b = jax.random.split(key, 4)
    q = jax.random.normal(k_q, (B, I), dtype=jnp.float32)
    der_prev = jax.random.normal(k_d, (B, I, D), dtype=jnp.float32)
    # Deterministic parameter init (the torch module leaves them uninitialized).
    weight = jax.random.normal(k_w, (H, I), dtype=jnp.float32) * 0.1
    bias = jax.random.normal(k_b, (H,), dtype=jnp.float32) * 0.1

    out, der = lagrangian_layer(q, der_prev, weight, bias)
    jax.block_until_ready((out, der))

    out_ref, der_ref = lagrangian_layer_reference(q, der_prev, weight, bias)
    assert out.shape == (B, H) and der.shape == (B, H, D)
    assert jnp.allclose(out, out_ref, atol=1e-5, rtol=1e-5)
    assert jnp.allclose(der, der_ref, atol=1e-5, rtol=1e-5)

    print("KERNEL_OK")
</pallas_src>

<mosaic_0001>
module attributes {stable_mosaic.version = 11 : i64} {
  func.func @lagrangian_layer_kernel(%arg0: i32, %arg1: memref<8x16xf32, #tpu.memory_space<vmem>>, %arg2: memref<16x96xf32, #tpu.memory_space<vmem>>, %arg3: memref<1x96xf32, #tpu.memory_space<vmem>>, %arg4: memref<8x32xf32, #tpu.memory_space<vmem>>, %arg5: memref<32x64xf32, #tpu.memory_space<vmem>>, %arg6: memref<8x32xf32, #tpu.memory_space<vmem>>, %arg7: memref<8x64xf32, #tpu.memory_space<vmem>>) attributes {dimension_semantics = [#tpu.dimension_semantics<parallel>], iteration_bounds = array<i64: 1>, scalar_prefetch = 0 : i64, scratch_operands = 0 : i64, tpu.core_type = #tpu.core_type<tc>, window_params = [{transform_indices = @transform_0, window_bounds = array<i64: 8, 16>}, {pipeline_mode = #tpu.pipeline_mode<synchronous>, transform_indices = @transform_1, window_bounds = array<i64: 16, 96>}, {pipeline_mode = #tpu.pipeline_mode<synchronous>, transform_indices = @transform_2, window_bounds = array<i64: 1, 96>}, {transform_indices = @transform_3, window_bounds = array<i64: 8, 32>}, {pipeline_mode = #tpu.pipeline_mode<synchronous>, transform_indices = @transform_4, window_bounds = array<i64: 32, 64>}, {transform_indices = @transform_5, window_bounds = array<i64: 8, 32>}, {transform_indices = @transform_6, window_bounds = array<i64: 8, 64>}]} {
    %c0 = arith.constant 0 : index
    %c0_0 = arith.constant 0 : index
    %0 = vector.load %arg1[%c0, %c0_0] : memref<8x16xf32, #tpu.memory_space<vmem>>, vector<8x16xf32>
    %c0_1 = arith.constant 0 : index
    %c0_2 = arith.constant 0 : index
    %1 = vector.load %arg2[%c0_1, %c0_2] : memref<16x96xf32, #tpu.memory_space<vmem>>, vector<16x96xf32>
    %cst = arith.constant dense<0.000000e+00> : vector<8x96xf32>
    %2 = tpu.matmul %0, %1, %cst {dimension_numbers = #tpu.dot_dimension_numbers<[1], [0], [0], [1], [0, 0, 1, 1], [], []>} : vector<8x16xf32>, vector<16x96xf32>, vector<8x96xf32> -> vector<8x96xf32>
    %c0_3 = arith.constant 0 : index
    %c0_4 = arith.constant 0 : index
    %3 = vector.load %arg3[%c0_3, %c0_4] : memref<1x96xf32, #tpu.memory_space<vmem>>, vector<1x96xf32>
    %4 = vector.broadcast %3 : vector<1x96xf32> to vector<8x96xf32>
    %5 = arith.addf %2, %4 : vector<8x96xf32>
    %6 = vector.extract_strided_slice %5 {offsets = [0, 0], sizes = [8, 32], strides = [1, 1]} : vector<8x96xf32> to vector<8x32xf32>
    %7 = vector.extract_strided_slice %5 {offsets = [0, 32], sizes = [8, 64], strides = [1, 1]} : vector<8x96xf32> to vector<8x64xf32>
    %cst_5 = arith.constant 0.000000e+00 : f32
    %8 = vector.broadcast %cst_5 : f32 to vector<8x32xf32>
    %9 = arith.maximumf %6, %8 : vector<8x32xf32>
    %c0_6 = arith.constant 0 : index
    %c0_7 = arith.constant 0 : index
    %10 = vector.load %arg6[%c0_6, %c0_7] : memref<8x32xf32, #tpu.memory_space<vmem>>, vector<8x32xf32>
    tpu.vector_store %arg6[%c0_6, %c0_7], %9 {strides = array<i32>} : memref<8x32xf32, #tpu.memory_space<vmem>>, vector<8x32xf32>,
    %c0_8 = arith.constant 0 : index
    %c0_9 = arith.constant 0 : index
    %11 = vector.load %arg4[%c0_8, %c0_9] : memref<8x32xf32, #tpu.memory_space<vmem>>, vector<8x32xf32>
    %c0_10 = arith.constant 0 : index
    %c0_11 = arith.constant 0 : index
    %12 = vector.load %arg5[%c0_10, %c0_11] : memref<32x64xf32, #tpu.memory_space<vmem>>, vector<32x64xf32>
    %cst_12 = arith.constant dense<0.000000e+00> : vector<8x64xf32>
    %13 = tpu.matmul %11, %12, %cst_12 {dimension_numbers = #tpu.dot_dimension_numbers<[1], [0], [0], [1], [0, 0, 1, 1], [], []>} : vector<8x32xf32>, vector<32x64xf32>, vector<8x64xf32> -> vector<8x64xf32>
    %cst_13 = arith.constant 0.000000e+00 : f32
    %14 = vector.broadcast %cst_13 : f32 to vector<8x64xf32>
    %15 = arith.cmpf ogt, %7, %14 : vector<8x64xf32>
    %cst_14 = arith.constant 0.000000e+00 : f32
    %16 = vector.broadcast %cst_14 : f32 to vector<8x64xf32>
    %17 = arith.select %15, %13, %16 : vector<8x64xi1>, vector<8x64xf32>
    %c0_15 = arith.constant 0 : index
    %c0_16 = arith.constant 0 : index
    %18 = vector.load %arg7[%c0_15, %c0_16] : memref<8x64xf32, #tpu.memory_space<vmem>>, vector<8x64xf32>
    tpu.vector_store %arg7[%c0_15, %c0_16], %17 {strides = array<i32>} : memref<8x64xf32, #tpu.memory_space<vmem>>, vector<8x64xf32>,
    return
  }
  func.func @transform_0(%arg0: i32) -> (i32, i32) {
    %c0_i32 = arith.constant 0 : i32
    %c0_i32_0 = arith.constant 0 : i32
    return %arg0, %c0_i32 : i32, i32
  }
  func.func @transform_1(%arg0: i32) -> (i32, i32) {
    %c0_i32 = arith.constant 0 : i32
    %c0_i32_0 = arith.constant 0 : i32
    %c0_i32_1 = arith.constant 0 : i32
    return %c0_i32, %c0_i32_0 : i32, i32
  }
  func.func @transform_2(%arg0: i32) -> (i32, i32) {
    %c0_i32 = arith.constant 0 : i32
    %c0_i32_0 = arith.constant 0 : i32
    %c0_i32_1 = arith.constant 0 : i32
    return %c0_i32, %c0_i32_0 : i32, i32
  }
  func.func @transform_3(%arg0: i32) -> (i32, i32) {
    %c0_i32 = arith.constant 0 : i32
    %c0_i32_0 = arith.constant 0 : i32
    return %arg0, %c0_i32 : i32, i32
  }
  func.func @transform_4(%arg0: i32) -> (i32, i32) {
    %c0_i32 = arith.constant 0 : i32
    %c0_i32_0 = arith.constant 0 : i32
    %c0_i32_1 = arith.constant 0 : i32
    return %c0_i32, %c0_i32_0 : i32, i32
  }
  func.func @transform_5(%arg0: i32) -> (i32, i32) {
    %c0_i32 = arith.constant 0 : i32
    %c0_i32_0 = arith.constant 0 : i32
    return %arg0, %c0_i32 : i32, i32
  }
  func.func @transform_6(%arg0: i32) -> (i32, i32) {
    %c0_i32 = arith.constant 0 : i32
    %c0_i32_0 = arith.constant 0 : i32
    return %arg0, %c0_i32 : i32, i32
  }
}

</mosaic_0001>

<llo_original>
// kernel: tpu_custom_call.1
$region0: #{tpu_custom_call.1}
  #allocation0 [shape = 'u32[]', space=smem, size = 0x4, offset = 0x4, fixed_abs, tag = 'smem constant byte address 0x4 - core index']
  #allocation1 [shape = 'u32[144,128]{1,0:T(1,128)}', space=vmem, size = 0x12000, scoped, tag = 'internal scratch']
  %s0 = inlined_call_operand.hbm [shape: f32[8,16], index: 0, kind: input, shape index: {}]
  %s1 = inlined_call_operand.hbm [shape: f32[16,96], index: 1, kind: input, shape index: {}]
  %s2 = inlined_call_operand.vmem [shape: f32[1,96], index: 2, kind: input, shape index: {}]
  %s3 = inlined_call_operand.vmem [shape: f32[8,32], index: 3, kind: input, shape index: {}]
  %s4 = inlined_call_operand.hbm [shape: f32[32,64], index: 4, kind: input, shape index: {}]
  %s5 = inlined_call_operand.hbm [shape: f32[8,32], index: 5, kind: output, shape index: {0}]
  %s6 = inlined_call_operand.hbm [shape: f32[8,64], index: 6, kind: output, shape index: {1}]
  %7 = xla_tuple %s5, %s6
  %s8 = sld [smem:[#allocation0]]
  $region50: #{tpu_custom_call.1} parent=0
    _
  %s10 = ssub.s32 1, %s8
  %s11 = scalar_select 0, %s10, %s8
  $region1: #{tpu_custom_call.1} parent=0
    #allocation2 [shape = 'u8[4096]{0}', space=vmem, size = 0x1000, scoped, tag = 'input window, operand 0, single buffered']
    #allocation3 [shape = 's32[1]{0}', space=sflag, size = 0x4, scoped, tag = 'scoped memory for tpu_custom_call.1']
    #allocation4 [shape = 's32[1]{0}', space=sflag, size = 0x4, scoped, tag = 'scoped memory for tpu_custom_call.1']
    #allocation5 [shape = 'u8[8192]{0}', space=vmem, size = 0x2000, scoped, tag = 'input window, operand 1, single buffered']
    #allocation6 [shape = 's32[1]{0}', space=sflag, size = 0x4, scoped, tag = 'scoped memory for tpu_custom_call.1']
    #allocation7 [shape = 'u8[16384]{0}', space=vmem, size = 0x4000, scoped, tag = 'input window, operand 4, single buffered']
    #allocation8 [shape = 'u8[4096]{0}', space=vmem, size = 0x1000, scoped, tag = 'output window, operand 0, single buffered']
    #allocation9 [shape = 'u8[4096]{0}', space=vmem, size = 0x1000, scoped, tag = 'output window, operand 1, single buffered']
    #allocation10 [shape = 's32[1]{0}', space=sflag, size = 0x4, scoped, tag = 'scoped memory for tpu_custom_call.1']
    %12 = vsyncpa [#allocation3], 0
    %13 = vsyncpa [#allocation6], 0
    %14 = vsyncpa [#allocation4], 0
    %15 = vsyncpa [#allocation10], 0
    // Predicated region
    $region2: #{tpu_custom_call.1} parent=1 // pred_check
      _
    $region3: #{tpu_custom_call.1} parent=1 // pred_check_branch
      %17 = sbr.rel (0) target = $region5
    $region4: #{tpu_custom_call.1} parent=1 // pred_region
      %s19 = ssub.s32 128, 128
      %20 = vsyncadd [#allocation3], %s19
      %s22 = sshll.u32 [#allocation2], 4
      %s23 = int_to_ptr.vmem [resolvable:$true] %s22
      %25 = dma.hbm_to_vmem [thread:$0]  %s0, 128, %s23, [#allocation3]
    $region5: #{tpu_custom_call.1} parent=1 // pred_fallthru
      _
    // Predicated region
    $region6: #{tpu_custom_call.1} parent=1 // pred_check
      _
    $region7: #{tpu_custom_call.1} parent=1 // pred_check_branch
      %27 = sbr.rel (0) target = $region9
    $region8: #{tpu_custom_call.1} parent=1 // pred_region
      %s29 = ssub.s32 256, 256
      %30 = vsyncadd [#allocation6], %s29
      %s31 = sshll.u32 [#allocation5], 4
      %s32 = int_to_ptr.vmem [resolvable:$true] %s31
      %37 = dma.hbm_to_vmem [thread:$0]  %s1, 256, %s32, [#allocation6], 128, 128, 8
    $region9: #{tpu_custom_call.1} parent=1 // pred_fallthru
      _
    // Predicated region
    $region10: #{tpu_custom_call.1} parent=1 // pred_check
      _
    $region11: #{tpu_custom_call.1} parent=1 // pred_check_branch
      %39 = sbr.rel (0) target = $region13
    $region12: #{tpu_custom_call.1} parent=1 // pred_region
      _
    $region13: #{tpu_custom_call.1} parent=1 // pred_fallthru
      _
    // Predicated region
    $region14: #{tpu_custom_call.1} parent=1 // pred_check
      _
    $region15: #{tpu_custom_call.1} parent=1 // pred_check_branch
      %41 = sbr.rel (0) target = $region17
    $region16: #{tpu_custom_call.1} parent=1 // pred_region
      _
    $region17: #{tpu_custom_call.1} parent=1 // pred_fallthru
      _
    // Predicated region
    $region18: #{tpu_custom_call.1} parent=1 // pred_check
      _
    $region19: #{tpu_custom_call.1} parent=1 // pred_check_branch
      %43 = sbr.rel (0) target = $region21
    $region20: #{tpu_custom_call.1} parent=1 // pred_region
      %s45 = ssub.s32 512, 512
      %46 = vsyncadd [#allocation6], %s45
      %s47 = sshll.u32 [#allocation7], 4
      %s48 = int_to_ptr.vmem [resolvable:$true] %s47
      %53 = dma.hbm_to_vmem [thread:$0]  %s4, 512, %s48, [#allocation6], 128, 128, 8
    $region21: #{tpu_custom_call.1} parent=1 // pred_fallthru
      _
    // Predicated region
    $region22: #{tpu_custom_call.1} parent=1 // pred_check
      _
    $region23: #{tpu_custom_call.1} parent=1 // pred_check_branch
      %55 = sbr.rel (0) target = $region25
    $region24: #{tpu_custom_call.1} parent=1 // pred_region
      %56 = dma.done [#allocation3], 128
    $region25: #{tpu_custom_call.1} parent=1 // pred_fallthru
      _
    // Predicated region
    $region26: #{tpu_custom_call.1} parent=1 // pred_check
      _
    $region27: #{tpu_custom_call.1} parent=1 // pred_check_branch
      %58 = sbr.rel (0) target = $region29
    $region28: #{tpu_custom_call.1} parent=1 // pred_region
      %59 = dma.done [#allocation6], 256
    $region29: #{tpu_custom_call.1} parent=1 // pred_fallthru
      _
    // Predicated region
    $region30: #{tpu_custom_call.1} parent=1 // pred_check
      _
    $region31: #{tpu_custom_call.1} parent=1 // pred_check_branch
      %61 = sbr.rel (0) target = $region33
    $region32: #{tpu_custom_call.1} parent=1 // pred_region
      %62 = dma.done [#allocation6], 512
    $region33: #{tpu_custom_call.1} parent=1 // pred_fallthru
      _
    %v63 = vld [vmem:[#allocation2] sm:$0xff]
    %v64 = vld [vmem:[#allocation5] sm:$0xff]
    %v65 = vld [vmem:[#allocation5 + $0x8] sm:$0xff]
    %v66 = vld [vmem:[%s2] sm:$0x1]
    %v68 = vlaneseq
    %v69 = vshrl.u32 %v68, 7
    %v70 = vsub.s32 0, %v69
    %v71 = vrot.slane %v66, %v70
    %vm73 = vcmask 130048
    %v75 = vsel %vm73, %v63, 0
    %77 = vmatprep.subr.mxu0 0.0
    %78 = vmatpush1.msra.mxu0 %v64
    %79 = vmatprep.subr.mxu0 0.0
    %80 = vmatpush1.msra.mxu0 %v65
    %81 = vmatprep.subr.mxu0 0.0
    %82 = vmatpush1.msra.mxu0 0.0
    %83 = vmatprep.subr.mxu0 0.0
    %84 = vmatpush1.msra.mxu0 0.0
    %85 = vmatprep.subr.mxu0 0.0
    %86 = vmatpush1.msra.mxu0 0.0
    %87 = vmatprep.subr.mxu0 0.0
    %88 = vmatpush1.msra.mxu0 0.0
    %89 = vmatprep.subr.mxu0 0.0
    %90 = vmatpush1.msra.mxu0 0.0
    %91 = vmatprep.subr.mxu0 0.0
    %92 = vmatpush1.msra.mxu0 0.0
    %93 = vmatprep.subr.mxu0 0.0
    %94 = vmatpush1.msra.mxu0 0.0
    %95 = vmatprep.subr.mxu0 0.0
    %96 = vmatpush1.msra.mxu0 0.0
    %97 = vmatprep.subr.mxu0 0.0
    %98 = vmatpush1.msra.mxu0 0.0
    %99 = vmatprep.subr.mxu0 0.0
    %100 = vmatpush1.msra.mxu0 0.0
    %101 = vmatprep.subr.mxu0 0.0
    %102 = vmatpush1.msra.mxu0 0.0
    %103 = vmatprep.subr.mxu0 0.0
    %104 = vmatpush1.msra.mxu0 0.0
    %105 = vmatprep.subr.mxu0 0.0
    %106 = vmatpush1.msra.mxu0 0.0
    %107 = vmatprep.subr.mxu0 0.0
    %108 = vmatpush1.msra.mxu0 0.0
    %109 = vmatprep.subr.mxu0 0.0
    %110 = vmatpush1.msra.mxu0 0.0
    %111 = vmatprep.subr.mxu0 0.0
    %112 = vmatpush1.msra.mxu0 0.0
    %113 = vmatprep.subr.mxu0 0.0
    %114 = vmatpush1.msra.mxu0 0.0
    %115 = vmatprep.subr.mxu0 0.0
    %116 = vmatpush1.msra.mxu0 0.0
    %117 = vmatprep.subr.mxu0 0.0
    %118 = vmatpush1.msra.mxu0 0.0
    %119 = vmatprep.subr.mxu0 0.0
    %120 = vmatpush1.msra.mxu0 0.0
    %121 = vmatprep.subr.mxu0 0.0
    %122 = vmatpush1.msra.mxu0 0.0
    %123 = vmatprep.subr.mxu0 0.0
    %124 = vmatpush1.msra.mxu0 0.0
    %125 = vmatprep.subr.mxu0 0.0
    %126 = vmatpush1.msra.mxu0 0.0
    %127 = vmatprep.subr.mxu0 0.0
    %128 = vmatpush1.msra.mxu0 0.0
    %129 = vmatprep.subr.mxu0 0.0
    %130 = vmatpush1.msra.mxu0 0.0
    %131 = vmatprep.subr.mxu0 0.0
    %132 = vmatpush1.msra.mxu0 0.0
    %133 = vmatprep.subr.mxu0 0.0
    %134 = vmatpush1.msra.mxu0 0.0
    %135 = vmatprep.subr.mxu0 0.0
    %136 = vmatpush1.msra.mxu0 0.0
    %137 = vmatprep.subr.mxu0 0.0
    %138 = vmatpush1.msra.mxu0 0.0
    %139 = vmatprep.subr.mxu0 0.0
    %140 = vmatpush1.msra.mxu0 0.0
    %141 = vmatprep.mubr.f32.mxu0 0.0
    %142 = vmatmul.mubr.f32.gmra.mrb[0].mxu0 %v75
    %v143 = vpop.f32.mrb[0].mxu0
    %v144 = vadd.f32 %v71, %v143
    %v145 = vpop.f32.mrb[0].mxu0
    %146 = vdwg.mxu0
    %v147 = vmax.f32 %v144, 0.0
    %vm148 = vcmask 261120
    %149 = vst.msk [vmem:[#allocation8] sm:$0xff] %vm148, %v147
    %v150 = vld [vmem:[%s3] sm:$0xff]
    %v151 = vld [vmem:[#allocation7] sm:$0xff]
    %v152 = vld [vmem:[#allocation7 + $0x8] sm:$0xff]
    %v153 = vld [vmem:[#allocation7 + $0x10] sm:$0xff]
    %v154 = vld [vmem:[#allocation7 + $0x18] sm:$0xff]
    %v156 = vsel %vm148, %v150, 0
    %158 = vmatprep.subr.mxu0 0.0
    %159 = vmatpush1.msra.mxu0 %v151
    %160 = vmatprep.subr.mxu0 0.0
    %161 = vmatpush1.msra.mxu0 %v152
    %162 = vmatprep.subr.mxu0 0.0
    %163 = vmatpush1.msra.mxu0 %v153
    %164 = vmatprep.subr.mxu0 0.0
    %165 = vmatpush1.msra.mxu0 %v154
    %166 = vmatprep.subr.mxu0 0.0
    %167 = vmatpush1.msra.mxu0 0.0
    %168 = vmatprep.subr.mxu0 0.0
    %169 = vmatpush1.msra.mxu0 0.0
    %170 = vmatprep.subr.mxu0 0.0
    %171 = vmatpush1.msra.mxu0 0.0
    %172 = vmatprep.subr.mxu0 0.0
    %173 = vmatpush1.msra.mxu0 0.0
    %174 = vmatprep.subr.mxu0 0.0
    %175 = vmatpush1.msra.mxu0 0.0
    %176 = vmatprep.subr.mxu0 0.0
    %177 = vmatpush1.msra.mxu0 0.0
    %178 = vmatprep.subr.mxu0 0.0
    %179 = vmatpush1.msra.mxu0 0.0
    %180 = vmatprep.subr.mxu0 0.0
    %181 = vmatpush1.msra.mxu0 0.0
    %182 = vmatprep.subr.mxu0 0.0
    %183 = vmatpush1.msra.mxu0 0.0
    %184 = vmatprep.subr.mxu0 0.0
    %185 = vmatpush1.msra.mxu0 0.0
    %186 = vmatprep.subr.mxu0 0.0
    %187 = vmatpush1.msra.mxu0 0.0
    %188 = vmatprep.subr.mxu0 0.0
    %189 = vmatpush1.msra.mxu0 0.0
    %190 = vmatprep.subr.mxu0 0.0
    %191 = vmatpush1.msra.mxu0 0.0
    %192 = vmatprep.subr.mxu0 0.0
    %193 = vmatpush1.msra.mxu0 0.0
    %194 = vmatprep.subr.mxu0 0.0
    %195 = vmatpush1.msra.mxu0 0.0
    %196 = vmatprep.subr.mxu0 0.0
    %197 = vmatpush1.msra.mxu0 0.0
    %198 = vmatprep.subr.mxu0 0.0
    %199 = vmatpush1.msra.mxu0 0.0
    %200 = vmatprep.subr.mxu0 0.0
    %201 = vmatpush1.msra.mxu0 0.0
    %202 = vmatprep.subr.mxu0 0.0
    %203 = vmatpush1.msra.mxu0 0.0
    %204 = vmatprep.subr.mxu0 0.0
    %205 = vmatpush1.msra.mxu0 0.0
    %206 = vmatprep.subr.mxu0 0.0
    %207 = vmatpush1.msra.mxu0 0.0
    %208 = vmatprep.subr.mxu0 0.0
    %209 = vmatpush1.msra.mxu0 0.0
    %210 = vmatprep.subr.mxu0 0.0
    %211 = vmatpush1.msra.mxu0 0.0
    %212 = vmatprep.subr.mxu0 0.0
    %213 = vmatpush1.msra.mxu0 0.0
    %214 = vmatprep.subr.mxu0 0.0
    %215 = vmatpush1.msra.mxu0 0.0
    %216 = vmatprep.subr.mxu0 0.0
    %217 = vmatpush1.msra.mxu0 0.0
    %218 = vmatprep.subr.mxu0 0.0
    %219 = vmatpush1.msra.mxu0 0.0
    %220 = vmatprep.subr.mxu0 0.0
    %221 = vmatpush1.msra.mxu0 0.0
    %222 = vmatprep.mubr.f32.mxu0 0.0
    %223 = vmatmul.mubr.f32.gmra.mrb[0].mxu0 %v156
    %v224 = vpop.f32.mrb[0].mxu0
    %v225 = vadd.f32 0.0, %v224
    %v226 = vpop.f32.mrb[0].mxu0
    %227 = vdwg.mxu0
    %vm228 = vcmp.gt.f32.partialorder %v144, 0.0
    %230 = vrot.lane.b32.xlu0 %v225, 32
    %v231 = vpop.permute.xlu0 %230
    %v233 = vsel %vm228, %v231, 0.0
    %235 = vrot.lane.b32.xlu0 %v233, 96
    %v236 = vpop.permute.xlu0 %235
    %vm238 = vcmask 523264
    %239 = vst.msk [vmem:[#allocation9] sm:$0xff] %vm238, %v236
    // Predicated region
    $region34: #{tpu_custom_call.1} parent=1 // pred_check
      _
    $region35: #{tpu_custom_call.1} parent=1 // pred_check_branch
      %241 = sbr.rel (0) target = $region37
    $region36: #{tpu_custom_call.1} parent=1 // pred_region
      %s243 = ssub.s32 128, 128
      %244 = vsyncadd [#allocation4], %s243
      %s246 = sshll.u32 [#allocation8], 4
      %s247 = int_to_ptr.vmem [resolvable:$true] %s246
      %249 = dma.vmem_to_hbm [thread:$0]  %s247, 128, %s5, [#allocation4]
    $region37: #{tpu_custom_call.1} parent=1 // pred_fallthru
      _
    // Predicated region
    $region38: #{tpu_custom_call.1} parent=1 // pred_check
      _
    $region39: #{tpu_custom_call.1} parent=1 // pred_check_branch
      %251 = sbr.rel (0) target = $region41
    $region40: #{tpu_custom_call.1} parent=1 // pred_region
      %s253 = ssub.s32 128, 128
      %254 = vsyncadd [#allocation10], %s253
      %s256 = sshll.u32 [#allocation9], 4
      %s257 = int_to_ptr.vmem [resolvable:$true] %s256
      %259 = dma.vmem_to_hbm [thread:$0]  %s257, 128, %s6, [#allocation10]
    $region41: #{tpu_custom_call.1} parent=1 // pred_fallthru
      _
    // Predicated region
    $region42: #{tpu_custom_call.1} parent=1 // pred_check
      _
    $region43: #{tpu_custom_call.1} parent=1 // pred_check_branch
      %261 = sbr.rel (0) target = $region45
    $region44: #{tpu_custom_call.1} parent=1 // pred_region
      %262 = dma.done [#allocation4], 128
    $region45: #{tpu_custom_call.1} parent=1 // pred_fallthru
      _
    // Predicated region
    $region46: #{tpu_custom_call.1} parent=1 // pred_check
      _
    $region47: #{tpu_custom_call.1} parent=1 // pred_check_branch
      %264 = sbr.rel (0) target = $region49
    $region48: #{tpu_custom_call.1} parent=1 // pred_region
      %265 = dma.done [#allocation10], 128
    $region49: #{tpu_custom_call.1} parent=1 // pred_fallthru
      _
    %266 = vsyncpa [#allocation3], 1
    %267 = vsyncpa [#allocation6], 1
    %268 = vsyncpa [#allocation4], 1
    %269 = vsyncpa [#allocation10], 1

</llo_original>
